<compile_context>
chip_gen: v6e
topology: v6e:2x2x1
jax: 0.10.0
libtpu: 0.0.40
codegen_flags: <defaults>
</compile_context>

<pallas_src>
import functools

import jax
import jax.numpy as jnp
from jax import lax
from jax.experimental import pallas as pl
from jax.experimental.pallas import tpu as pltpu


def _tpu_vmem_capacity_bytes():
    """Best-effort VMEM capacity query; conservative (v7x-sized) fallback."""
    try:
        return int(pltpu.get_tpu_info().vmem_capacity_bytes)
    except Exception:
        return 64 * 1024 * 1024


def _choose_tiles(B, V, L, itemsize, target_block_bytes, min_grid_steps):
    """Pick (TB, TV) so one (TB, TV, L) block is ~target_block_bytes of x.dtype,
    then guarantee enough grid steps to keep the DMA pipeline (and both v7x
    TensorCores) busy."""
    row_bytes = itemsize * L
    slab_bytes = V * row_bytes                       # one full (1, V, L) slab
    if slab_bytes <= target_block_bytes:
        tb = int(min(B, max(1, target_block_bytes // slab_bytes)))
        tv = V
    else:
        tb = 1
        if V <= 128:
            tv = V
        else:
            # Keep TV a multiple of 128 (lane width) so the lane-dense residual
            # block and the x block stay tile-aligned even at V boundaries.
            tv = int((target_block_bytes // row_bytes) // 128 * 128)
            tv = int(min(V, max(128, tv)))

    def n_steps(tb_, tv_):
        return pl.cdiv(B, tb_) * pl.cdiv(V, tv_)

    # Shrink the batch tile first (cheap), then the variate tile (128-aligned),
    # until we have enough grid steps for double-buffering / megacore sharding.
    while tb > 1 and n_steps(tb, tv) < min_grid_steps:
        tb = max(1, tb // 2)
    while tv > 128 and n_steps(tb, tv) < min_grid_steps:
        new_tv = max(128, ((tv // 2 + 127) // 128) * 128)
        if new_tv >= tv:
            break
        tv = new_tv
    return tb, tv


# ---------------------------------------------------------------------------
# Forward kernel: per-(batch, variate) instance norm over the time axis, fused
# with the affine rescale as out = x * scale + shift.  Single-pass mean/var;
# lane-dense (TB, 2, TV) residual for the reverse pass.
# ---------------------------------------------------------------------------
def _revin_fwd_kernel(x_ref, gamma_ref, beta_ref, out_ref, stats_ref, *, eps):
    x = x_ref[...].astype(jnp.float32)                        # (TB, TV, L)
    inv_l = 1.0 / x.shape[-1]                                 # static
    mean2 = jnp.sum(x, axis=-1) * inv_l                       # (TB, TV)
    ex2 = jnp.sum(x * x, axis=-1) * inv_l                     # (TB, TV)
    var2 = jnp.maximum(ex2 - mean2 * mean2, 0.0)              # (TB, TV), >= 0

    mean = mean2[:, :, None]                                  # (TB, TV, 1)
    var = var2[:, :, None]
    gamma = gamma_ref[...].astype(jnp.float32)[:, :, None]    # (1, TV, 1)
    beta = beta_ref[...].astype(jnp.float32)[:, :, None]

    scale = gamma * lax.rsqrt(jnp.maximum(var, eps))          # == gamma * clamp(var).rsqrt()
    shift = beta - mean * scale
    out_ref[...] = (x * scale + shift).astype(out_ref.dtype)

    # Lane-dense residuals: row 0 = mean, row 1 = var (V on the lane axis).
    stats_ref[:, 0, :] = mean2.astype(stats_ref.dtype)
    stats_ref[:, 1, :] = var2.astype(stats_ref.dtype)


# ---------------------------------------------------------------------------
# Reverse kernel: undo affine + instance norm using the saved mean/var,
# fused as out = y * s + shift with per-variate s = sqrt(var)/clamp(gamma).
# ---------------------------------------------------------------------------
def _revin_rev_kernel(y_ref, gamma_ref, beta_ref, stats_ref, out_ref, *, eps):
    y = y_ref[...].astype(jnp.float32)                        # (TB, TV, L)
    gamma = gamma_ref[...].astype(jnp.float32)[:, :, None]    # (1, TV, 1)
    beta = beta_ref[...].astype(jnp.float32)[:, :, None]
    stats = stats_ref[...].astype(jnp.float32)                # (TB, 2, TV)
    mean = stats[:, 0, :][:, :, None]                         # (TB, TV, 1)
    var = stats[:, 1, :][:, :, None]                          # (TB, TV, 1)

    # torch: sign(gamma) * max(|gamma|, eps)  (division by 0 at gamma == 0,
    # exactly like the original module).
    clamped_gamma = jnp.sign(gamma) * jnp.maximum(jnp.abs(gamma), eps)
    # EUP approx reciprocal (free slot) + one Newton step: only TV values.
    inv_gamma = pl.reciprocal(clamped_gamma, approx=True)
    inv_gamma = inv_gamma * (2.0 - clamped_gamma * inv_gamma)

    s = inv_gamma * jnp.sqrt(var)                             # (TB, TV, 1)
    shift = mean - beta * s
    out_ref[...] = (y * s + shift).astype(out_ref.dtype)


def revin_forward(x, gamma, beta, *, eps=1e-5,
                  target_block_bytes=None, min_grid_steps=None):
    """Pallas RevIN: returns (rescaled, reverse_fn), mirroring RevIN.forward."""
    B, V, L = x.shape
    gamma_ld = jnp.reshape(gamma, (1, V)).astype(jnp.float32)   # lane-dense params
    beta_ld = jnp.reshape(beta, (1, V)).astype(jnp.float32)

    # Generation-aware block sizing + explicit VMEM limit.
    vmem_cap = _tpu_vmem_capacity_bytes()
    big_vmem = vmem_cap >= 96 * 1024 * 1024          # v5e / v6e (128 MiB/TC)
    if target_block_bytes is None:
        target_block_bytes = (6 if big_vmem else 3) * 1024 * 1024
    if min_grid_steps is None:
        min_grid_steps = 4 if big_vmem else 8        # v7x: 2 TCs + pipelining
    vmem_limit_bytes = min((64 if big_vmem else 48) * 1024 * 1024,
                           int(vmem_cap * 3 // 4))

    itemsize = jnp.dtype(x.dtype).itemsize
    tb, tv = _choose_tiles(B, V, L, itemsize, target_block_bytes, min_grid_steps)
    grid = (pl.cdiv(B, tb), pl.cdiv(V, tv))

    x_spec = pl.BlockSpec((tb, tv, L), lambda bi, vi: (bi, vi, 0))
    par_spec = pl.BlockSpec((1, tv), lambda bi, vi: (0, vi))
    stat_spec = pl.BlockSpec((tb, 2, tv), lambda bi, vi: (bi, 0, vi))

    stream_bytes = 2 * B * V * L * itemsize + 4 * B * V * 4 + 2 * V * 4
    fwd_cost = pl.CostEstimate(
        flops=5 * B * V * L, transcendentals=B * V, bytes_accessed=stream_bytes)
    rev_cost = pl.CostEstimate(
        flops=2 * B * V * L + 8 * B * V, transcendentals=2 * B * V,
        bytes_accessed=stream_bytes)
    cparams = pltpu.CompilerParams(
        dimension_semantics=("parallel", "parallel"),
        vmem_limit_bytes=vmem_limit_bytes)

    fwd = pl.pallas_call(
        functools.partial(_revin_fwd_kernel, eps=eps),
        out_shape=(
            jax.ShapeDtypeStruct((B, V, L), x.dtype),
            jax.ShapeDtypeStruct((B, 2, V), jnp.float32),   # [mean; var]
        ),
        grid_spec=pltpu.PrefetchScalarGridSpec(
            num_scalar_prefetch=0,
            grid=grid,
            in_specs=[x_spec, par_spec, par_spec],
            out_specs=[x_spec, stat_spec],
        ),
        compiler_params=cparams,
        cost_estimate=fwd_cost,
    )
    rescaled, stats = fwd(x, gamma_ld, beta_ld)

    def reverse_fn(scaled_output):
        rev = pl.pallas_call(
            functools.partial(_revin_rev_kernel, eps=eps),
            out_shape=jax.ShapeDtypeStruct((B, V, L), scaled_output.dtype),
            grid_spec=pltpu.PrefetchScalarGridSpec(
                num_scalar_prefetch=0,
                grid=grid,
                in_specs=[x_spec, par_spec, par_spec, stat_spec],
                out_specs=x_spec,
            ),
            compiler_params=cparams,
            cost_estimate=rev_cost,
        )
        return rev(scaled_output, gamma_ld, beta_ld, stats)

    return rescaled, reverse_fn


# ---------------------------------------------------------------------------
# Pure-JAX reference (matches the PyTorch module).
# ---------------------------------------------------------------------------
def _reference(x, gamma, beta, eps):
    mean = jnp.mean(x, axis=-1, keepdims=True)
    var = jnp.mean((x - mean) ** 2, axis=-1, keepdims=True)
    normed = (x - mean) * lax.rsqrt(jnp.maximum(var, eps))
    g = jnp.reshape(gamma, (1, -1, 1))
    b = jnp.reshape(beta, (1, -1, 1))
    rescaled = normed * g + b

    def rev(y):
        cg = jnp.sign(g) * jnp.maximum(jnp.abs(g), eps)
        return (y - b) / cg * jnp.sqrt(var) + mean

    return rescaled, rev


if __name__ == "__main__":
    eps = 1e-5

    # --- test 1: module-default init (gamma=1, beta=0), small shapes ---
    B, V, L = 2, 4, 16
    key = jax.random.PRNGKey(0)
    x = jax.random.normal(key, (B, V, L), dtype=jnp.float32) * 3.0 + 1.5
    gamma = jnp.ones((V, 1), dtype=jnp.float32)
    beta = jnp.zeros((V, 1), dtype=jnp.float32)

    rescaled, reverse_fn = revin_forward(x, gamma, beta, eps=eps)
    rescaled = jax.block_until_ready(rescaled)
    ref_rescaled, _ = _reference(x, gamma, beta, eps)
    assert jnp.allclose(rescaled, ref_rescaled, atol=1e-4, rtol=1e-4)

    recon = jax.block_until_ready(reverse_fn(rescaled))
    assert jnp.allclose(recon, x, atol=1e-3, rtol=1e-4)

    # --- test 2: non-trivial gamma/beta + tiny block budget to force the tiled
    # grid (batch axis x 128-wide lane-aligned variate tiles) ---
    B2, V2, L2 = 3, 256, 128
    k1, k2, k3 = jax.random.split(jax.random.PRNGKey(0), 3)
    x2 = jax.random.normal(k1, (B2, V2, L2), dtype=jnp.float32) * 2.0 - 0.5
    gamma2 = 0.5 + jax.random.uniform(k2, (V2, 1), dtype=jnp.float32)
    beta2 = 0.1 * jax.random.normal(k3, (V2, 1), dtype=jnp.float32)

    rescaled2, reverse_fn2 = revin_forward(
        x2, gamma2, beta2, eps=eps, target_block_bytes=64 * 1024)
    rescaled2 = jax.block_until_ready(rescaled2)
    ref_rescaled2, ref_rev2 = _reference(x2, gamma2, beta2, eps)
    assert jnp.allclose(rescaled2, ref_rescaled2, atol=1e-4, rtol=1e-4)

    recon2 = jax.block_until_ready(reverse_fn2(rescaled2))
    assert jnp.allclose(recon2, ref_rev2(rescaled2), atol=1e-3, rtol=1e-3)
    assert jnp.allclose(recon2, x2, atol=1e-3, rtol=1e-3)

    print("KERNEL_OK")
</pallas_src>

<mosaic_0001>
module attributes {stable_mosaic.version = 11 : i64} {
  func.func @_revin_fwd_kernel(%arg0: i32, %arg1: i32, %arg2: memref<1x4x16xf32, #tpu.memory_space<vmem>>, %arg3: memref<1x4xf32, #tpu.memory_space<vmem>>, %arg4: memref<1x4xf32, #tpu.memory_space<vmem>>, %arg5: memref<1x4x16xf32, #tpu.memory_space<vmem>>, %arg6: memref<1x2x4xf32, #tpu.memory_space<vmem>>) attributes {dimension_semantics = [#tpu.dimension_semantics<parallel>, #tpu.dimension_semantics<parallel>], iteration_bounds = array<i64: 2, 1>, scalar_prefetch = 0 : i64, scratch_operands = 0 : i64, tpu.core_type = #tpu.core_type<tc>, window_params = [{transform_indices = @transform_0, window_bounds = array<i64: 1, 4, 16>}, {transform_indices = @transform_1, window_bounds = array<i64: 1, 4>}, {transform_indices = @transform_2, window_bounds = array<i64: 1, 4>}, {transform_indices = @transform_3, window_bounds = array<i64: 1, 4, 16>}, {transform_indices = @transform_4, window_bounds = array<i64: 1, 2, 4>}]} {
    %c0 = arith.constant 0 : index
    %c0_0 = arith.constant 0 : index
    %c0_1 = arith.constant 0 : index
    %0 = vector.load %arg2[%c0, %c0_0, %c0_1] : memref<1x4x16xf32, #tpu.memory_space<vmem>>, vector<1x4x16xf32>
    %cst = arith.constant dense<0.000000e+00> : vector<1x4xf32>
    %1 = vector.multi_reduction <add>, %0, %cst [2] : vector<1x4x16xf32> to vector<1x4xf32>
    %cst_2 = arith.constant 6.250000e-02 : f32
    %2 = vector.broadcast %cst_2 : f32 to vector<1x4xf32>
    %3 = arith.mulf %1, %2 : vector<1x4xf32>
    %4 = arith.mulf %0, %0 : vector<1x4x16xf32>
    %cst_3 = arith.constant dense<0.000000e+00> : vector<1x4xf32>
    %5 = vector.multi_reduction <add>, %4, %cst_3 [2] : vector<1x4x16xf32> to vector<1x4xf32>
    %cst_4 = arith.constant 6.250000e-02 : f32
    %6 = vector.broadcast %cst_4 : f32 to vector<1x4xf32>
    %7 = arith.mulf %5, %6 : vector<1x4xf32>
    %8 = arith.mulf %3, %3 : vector<1x4xf32>
    %9 = arith.subf %7, %8 : vector<1x4xf32>
    %cst_5 = arith.constant 0.000000e+00 : f32
    %10 = vector.broadcast %cst_5 : f32 to vector<1x4xf32>
    %11 = arith.maximumf %9, %10 : vector<1x4xf32>
    %12 = vector.shape_cast %3 : vector<1x4xf32> to vector<1x4x1xf32>
    %13 = vector.shape_cast %11 : vector<1x4xf32> to vector<1x4x1xf32>
    %c0_6 = arith.constant 0 : index
    %c0_7 = arith.constant 0 : index
    %14 = vector.load %arg3[%c0_6, %c0_7] : memref<1x4xf32, #tpu.memory_space<vmem>>, vector<1x4xf32>
    %15 = vector.shape_cast %14 : vector<1x4xf32> to vector<1x4x1xf32>
    %c0_8 = arith.constant 0 : index
    %c0_9 = arith.constant 0 : index
    %16 = vector.load %arg4[%c0_8, %c0_9] : memref<1x4xf32, #tpu.memory_space<vmem>>, vector<1x4xf32>
    %17 = vector.shape_cast %16 : vector<1x4xf32> to vector<1x4x1xf32>
    %cst_10 = arith.constant 9.99999974E-6 : f32
    %18 = vector.broadcast %cst_10 : f32 to vector<1x4x1xf32>
    %19 = arith.maximumf %13, %18 : vector<1x4x1xf32>
    %20 = math.rsqrt %19 : vector<1x4x1xf32>
    %21 = arith.mulf %15, %20 : vector<1x4x1xf32>
    %22 = arith.mulf %12, %21 : vector<1x4x1xf32>
    %23 = arith.subf %17, %22 : vector<1x4x1xf32>
    %24 = vector.broadcast %21 : vector<1x4x1xf32> to vector<1x4x16xf32>
    %25 = arith.mulf %0, %24 : vector<1x4x16xf32>
    %26 = vector.broadcast %23 : vector<1x4x1xf32> to vector<1x4x16xf32>
    %27 = arith.addf %25, %26 : vector<1x4x16xf32>
    %c0_11 = arith.constant 0 : index
    %c0_12 = arith.constant 0 : index
    %c0_13 = arith.constant 0 : index
    %28 = vector.load %arg5[%c0_11, %c0_12, %c0_13] : memref<1x4x16xf32, #tpu.memory_space<vmem>>, vector<1x4x16xf32>
    tpu.vector_store %arg5[%c0_11, %c0_12, %c0_13], %27 {strides = array<i32>} : memref<1x4x16xf32, #tpu.memory_space<vmem>>, vector<1x4x16xf32>,
    %c0_14 = arith.constant 0 : index
    %c0_15 = arith.constant 0 : index
    %c0_16 = arith.constant 0 : index
    %29 = vector.load %arg6[%c0_14, %c0_15, %c0_16] : memref<1x2x4xf32, #tpu.memory_space<vmem>>, vector<1x1x4xf32>
    %30 = vector.shape_cast %29 : vector<1x1x4xf32> to vector<1x4xf32>
    %31 = vector.shape_cast %3 : vector<1x4xf32> to vector<1x1x4xf32>
    tpu.vector_store %arg6[%c0_14, %c0_15, %c0_16], %31 {strides = array<i32>} : memref<1x2x4xf32, #tpu.memory_space<vmem>>, vector<1x1x4xf32>,
    %c0_17 = arith.constant 0 : index
    %c1 = arith.constant 1 : index
    %c0_18 = arith.constant 0 : index
    %32 = vector.load %arg6[%c0_17, %c1, %c0_18] : memref<1x2x4xf32, #tpu.memory_space<vmem>>, vector<1x1x4xf32>
    %33 = vector.shape_cast %32 : vector<1x1x4xf32> to vector<1x4xf32>
    %34 = vector.shape_cast %11 : vector<1x4xf32> to vector<1x1x4xf32>
    tpu.vector_store %arg6[%c0_17, %c1, %c0_18], %34 {strides = array<i32>} : memref<1x2x4xf32, #tpu.memory_space<vmem>>, vector<1x1x4xf32>,
    return
  }
  func.func @transform_0(%arg0: i32, %arg1: i32) -> (i32, i32, i32) {
    %c0_i32 = arith.constant 0 : i32
    %c0_i32_0 = arith.constant 0 : i32
    return %arg0, %arg1, %c0_i32 : i32, i32, i32
  }
  func.func @transform_1(%arg0: i32, %arg1: i32) -> (i32, i32) {
    %c0_i32 = arith.constant 0 : i32
    %c0_i32_0 = arith.constant 0 : i32
    return %c0_i32, %arg1 : i32, i32
  }
  func.func @transform_2(%arg0: i32, %arg1: i32) -> (i32, i32) {
    %c0_i32 = arith.constant 0 : i32
    %c0_i32_0 = arith.constant 0 : i32
    return %c0_i32, %arg1 : i32, i32
  }
  func.func @transform_3(%arg0: i32, %arg1: i32) -> (i32, i32, i32) {
    %c0_i32 = arith.constant 0 : i32
    %c0_i32_0 = arith.constant 0 : i32
    return %arg0, %arg1, %c0_i32 : i32, i32, i32
  }
  func.func @transform_4(%arg0: i32, %arg1: i32) -> (i32, i32, i32) {
    %c0_i32 = arith.constant 0 : i32
    %c0_i32_0 = arith.constant 0 : i32
    return %arg0, %c0_i32, %arg1 : i32, i32, i32
  }
}

</mosaic_0001>

<llo_original>
// kernel: tpu_custom_call.1
$region0: #{tpu_custom_call.1}
  #allocation0 [shape = 'u32[]', space=smem, size = 0x4, offset = 0x4, fixed_abs, tag = 'smem constant byte address 0x4 - core index']
  #allocation1 [shape = 'u32[144,128]{1,0:T(1,128)}', space=vmem, size = 0x12000, scoped, tag = 'internal scratch']
  %s0 = inlined_call_operand.hbm [shape: f32[2,4,16], index: 0, kind: input, shape index: {}]
  %s1 = inlined_call_operand.vmem [shape: f32[1,4], index: 1, kind: input, shape index: {}]
  %s2 = inlined_call_operand.vmem [shape: f32[1,4], index: 2, kind: input, shape index: {}]
  %s3 = inlined_call_operand.hbm [shape: f32[2,4,16], index: 3, kind: output, shape index: {0}]
  %s4 = inlined_call_operand.hbm [shape: f32[2,2,4], index: 4, kind: output, shape index: {1}]
  %5 = xla_tuple %s3, %s4
  %s6 = sld [smem:[#allocation0]]
  $region57: #{tpu_custom_call.1} parent=0
    _
  %s8 = ssub.s32 1, %s6
  %s9 = scalar_select 0, %s8, %s6
  $region1: #{tpu_custom_call.1} parent=0
    #allocation2 [shape = 'u8[4096]{0}', space=vmem, size = 0x1000, scoped, tag = 'input window, operand 0']
    #allocation3 [shape = 's32[2]{0}', space=sflag, size = 0x8, scoped, tag = 'scoped memory for tpu_custom_call.1']
    #allocation4 [shape = 's32[2]{0}', space=sflag, size = 0x8, scoped, tag = 'scoped memory for tpu_custom_call.1']
    #allocation5 [shape = 'u8[4096]{0}', space=vmem, size = 0x1000, scoped, tag = 'output window, operand 0']
    #allocation6 [shape = 'u8[2048]{0}', space=vmem, size = 0x800, scoped, tag = 'output window, operand 1']
    #allocation7 [shape = 's32[2]{0}', space=sflag, size = 0x8, scoped, tag = 'scoped memory for tpu_custom_call.1']
    %10 = vsyncpa [#allocation3], 0
    %s11 = scalar_lea.sflag [#allocation3], 1
    %12 = vsyncpa %s11, 0
    %13 = vsyncpa [#allocation4], 0
    %s14 = scalar_lea.sflag [#allocation4], 1
    %15 = vsyncpa %s14, 0
    %16 = vsyncpa [#allocation7], 0
    %s17 = scalar_lea.sflag [#allocation7], 1
    %18 = vsyncpa %s17, 0
    loop: start=0, step=1, limit=4
    $region2: #{tpu_custom_call.1} parent=1 // loop_pre_header
      _
    $region3: #{tpu_custom_call.1} parent=1 // loop_header
      %s20 = sphi 0, %s24
      %p21 = scmp.ge.s32.totalorder %s20, 4
      %s27 = sphi 0, %s39
      %s28 = sphi 0, %s35
      %s29 = sphi 0, %s27
      %s30 = sphi 0, %s28
      %s31 = sphi 0, %s29
      %s32 = sphi 0, %s30
      %s44 = sphi 0, %s46
      %s47 = sphi 0, %s44
      %s48 = sphi 0, %s47
      %s64 = sphi 0, %s48
      %s70 = sphi 0, %s72
      %s73 = sphi 0, %s70
      %s74 = sphi 0, %s73
      %s90 = sphi 0, %s74
      %s96 = sphi 0, %s98
      %s99 = sphi 0, %s96
      %s100 = sphi 0, %s99
      %s116 = sphi 0, %s100
      %s124 = sphi 0, %s126
      %s127 = sphi 0, %s124
      %s128 = sphi 0, %s127
      %s144 = sphi 0, %s128
      %s152 = sphi 0, %s154
      %s155 = sphi 0, %s152
      %s156 = sphi 0, %s155
      %s172 = sphi 0, %s156
    $region4: #{tpu_custom_call.1} parent=1 // loop_header_branch
      %23 = sbr.rel (%p21) target = $region8
    $region5: #{tpu_custom_call.1} parent=1 // loop_body
      %s25 = ssub.s32 %s20, 1
      %s26 = ssub.s32 %s20, 2
      %s33 = sadd.s32 1, %s28
      %p34 = scmp.ge.s32.totalorder %s33, 1
      %s35 = scalar_select %p34, 0, %s33
      %s36 = sadd.s32 1, %s27
      %s37 = scalar_select %p34, %s36, %s27
      %p38 = scmp.ge.s32.totalorder %s37, 2
      %s39 = scalar_select %p38, 0, %s37
      %s40 = ssub.s32 %s27, %s39
      %s41 = ssub.s32 %s28, %s35
      %s42 = sor.u32 %s40, %s41
      %p43 = scmp.eq.s32.totalorder %s42, 0
      %s45 = sadd.s32 %s44, 1
      %s46 = scalar_select %p43, %s44, %s45
      %p49 = pneg %p43
      %p50 = scmp.eq.s32.totalorder %s20, 1
      %p51 = por %p49, %p50
      %p52 = scmp.ne.s32.totalorder %s44, %s47
      %p53 = scmp.eq.s32.totalorder %s20, 0
      %p54 = por %p52, %p53
      %p55 = scmp.ne.s32.totalorder %s44, %s47
      %p56 = scmp.eq.s32.totalorder %s25, 1
      %p57 = por %p55, %p56
      %p58 = scmp.ne.s32.totalorder %s47, %s48
      %p59 = scmp.eq.s32.totalorder %s25, 0
      %p60 = por %p58, %p59
      %p61 = scmp.ne.s32.totalorder %s47, %s48
      %p62 = scmp.eq.s32.totalorder %s26, 1
      %p63 = por %p61, %p62
      %p65 = scmp.ne.s32.totalorder %s48, %s64
      %p66 = scmp.eq.s32.totalorder %s26, 0
      %p67 = por %p65, %p66
      %s68 = ssub.s32 %s28, %s35
      %p69 = scmp.eq.s32.totalorder %s68, 0
      %s71 = sadd.s32 %s70, 1
      %s72 = scalar_select %p69, %s70, %s71
      %p75 = pneg %p69
      %p76 = scmp.eq.s32.totalorder %s20, 1
      %p77 = por %p75, %p76
      %p78 = scmp.ne.s32.totalorder %s70, %s73
      %p79 = scmp.eq.s32.totalorder %s20, 0
      %p80 = por %p78, %p79
      %p81 = scmp.ne.s32.totalorder %s70, %s73
      %p82 = scmp.eq.s32.totalorder %s25, 1
      %p83 = por %p81, %p82
      %p84 = scmp.ne.s32.totalorder %s73, %s74
      %p85 = scmp.eq.s32.totalorder %s25, 0
      %p86 = por %p84, %p85
      %p87 = scmp.ne.s32.totalorder %s73, %s74
      %p88 = scmp.eq.s32.totalorder %s26, 1
      %p89 = por %p87, %p88
      %p91 = scmp.ne.s32.totalorder %s74, %s90
      %p92 = scmp.eq.s32.totalorder %s26, 0
      %p93 = por %p91, %p92
      %s94 = ssub.s32 %s28, %s35
      %p95 = scmp.eq.s32.totalorder %s94, 0
      %s97 = sadd.s32 %s96, 1
      %s98 = scalar_select %p95, %s96, %s97
      %p101 = pneg %p95
      %p102 = scmp.eq.s32.totalorder %s20, 1
      %p103 = por %p101, %p102
      %p104 = scmp.ne.s32.totalorder %s96, %s99
      %p105 = scmp.eq.s32.totalorder %s20, 0
      %p106 = por %p104, %p105
      %p107 = scmp.ne.s32.totalorder %s96, %s99
      %p108 = scmp.eq.s32.totalorder %s25, 1
      %p109 = por %p107, %p108
      %p110 = scmp.ne.s32.totalorder %s99, %s100
      %p111 = scmp.eq.s32.totalorder %s25, 0
      %p112 = por %p110, %p111
      %p113 = scmp.ne.s32.totalorder %s99, %s100
      %p114 = scmp.eq.s32.totalorder %s26, 1
      %p115 = por %p113, %p114
      %p117 = scmp.ne.s32.totalorder %s100, %s116
      %p118 = scmp.eq.s32.totalorder %s26, 0
      %p119 = por %p117, %p118
      %s120 = ssub.s32 %s27, %s39
      %s121 = ssub.s32 %s28, %s35
      %s122 = sor.u32 %s120, %s121
      %p123 = scmp.eq.s32.totalorder %s122, 0
      %s125 = sadd.s32 %s124, 1
      %s126 = scalar_select %p123, %s124, %s125
      %p129 = pneg %p123
      %p130 = scmp.eq.s32.totalorder %s20, 1
      %p131 = por %p129, %p130
      %p132 = scmp.ne.s32.totalorder %s124, %s127
      %p133 = scmp.eq.s32.totalorder %s20, 0
      %p134 = por %p132, %p133
      %p135 = scmp.ne.s32.totalorder %s124, %s127
      %p136 = scmp.eq.s32.totalorder %s25, 1
      %p137 = por %p135, %p136
      %p138 = scmp.ne.s32.totalorder %s127, %s128
      %p139 = scmp.eq.s32.totalorder %s25, 0
      %p140 = por %p138, %p139
      %p141 = scmp.ne.s32.totalorder %s127, %s128
      %p142 = scmp.eq.s32.totalorder %s26, 1
      %p143 = por %p141, %p142
      %p145 = scmp.ne.s32.totalorder %s128, %s144
      %p146 = scmp.eq.s32.totalorder %s26, 0
      %p147 = por %p145, %p146
      %s148 = ssub.s32 %s27, %s39
      %s149 = ssub.s32 %s28, %s35
      %s150 = sor.u32 %s148, %s149
      %p151 = scmp.eq.s32.totalorder %s150, 0
      %s153 = sadd.s32 %s152, 1
      %s154 = scalar_select %p151, %s152, %s153
      %p157 = pneg %p151
      %p158 = scmp.eq.s32.totalorder %s20, 1
      %p159 = por %p157, %p158
      %p160 = scmp.ne.s32.totalorder %s152, %s155
      %p161 = scmp.eq.s32.totalorder %s20, 0
      %p162 = por %p160, %p161
      %p163 = scmp.ne.s32.totalorder %s152, %s155
      %p164 = scmp.eq.s32.totalorder %s25, 1
      %p165 = por %p163, %p164
      %p166 = scmp.ne.s32.totalorder %s155, %s156
      %p167 = scmp.eq.s32.totalorder %s25, 0
      %p168 = por %p166, %p167
      %p169 = scmp.ne.s32.totalorder %s155, %s156
      %p170 = scmp.eq.s32.totalorder %s26, 1
      %p171 = por %p169, %p170
      %p173 = scmp.ne.s32.totalorder %s156, %s172
      %p174 = scmp.eq.s32.totalorder %s26, 0
      %p175 = por %p173, %p174
      %p176 = scmp.le.s32.totalorder 1, %s20
      %p177 = scmp.lt.s32.totalorder %s20, 3
      %p178 = pnand %p176, %p177
      %p179 = pneg %p178
      // Predicated region
      $region9: #{tpu_custom_call.1} parent=5 // pred_check
        _
      $region10: #{tpu_custom_call.1} parent=5 // pred_check_branch
        %181 = sbr.rel (%p178) target = $region12
      $region11: #{tpu_custom_call.1} parent=5 // pred_region
        %s182 = ssub.s32 %s20, 1
        // Predicated region
        $region13: #{tpu_custom_call.1} parent=11 // pred_check
          %p183 = pneg %p86
        $region14: #{tpu_custom_call.1} parent=11 // pred_check_branch
          %185 = sbr.rel (%p183) target = $region16
        $region15: #{tpu_custom_call.1} parent=11 // pred_region
          %p186 = scmp.lt.s32.totalorder %s30, 0
          %s187 = scalar_select %p186, %s30, 0
          %s188 = scalar_lea.vmem %s1, %s187
        $region16: #{tpu_custom_call.1} parent=11 // pred_fallthru
          _
        // Predicated region
        $region17: #{tpu_custom_call.1} parent=11 // pred_check
          %p189 = pneg %p112
        $region18: #{tpu_custom_call.1} parent=11 // pred_check_branch
          %191 = sbr.rel (%p189) target = $region20
        $region19: #{tpu_custom_call.1} parent=11 // pred_region
          %p192 = scmp.lt.s32.totalorder %s30, 0
          %s193 = scalar_select %p192, %s30, 0
          %s194 = scalar_lea.vmem %s2, %s193
        $region20: #{tpu_custom_call.1} parent=11 // pred_fallthru
          _
      $region12: #{tpu_custom_call.1} parent=5 // pred_fallthru
        _
      %p195 = scmp.lt.s32.totalorder %s20, 2
      // Predicated region
      $region21: #{tpu_custom_call.1} parent=5 // pred_check
        %p196 = pneg %p195
      $region22: #{tpu_custom_call.1} parent=5 // pred_check_branch
        %198 = sbr.rel (%p196) target = $region24
      $region23: #{tpu_custom_call.1} parent=5 // pred_region
        // Predicated region
        $region25: #{tpu_custom_call.1} parent=23 // pred_check
          %p199 = pneg %p54
        $region26: #{tpu_custom_call.1} parent=23 // pred_check_branch
          %201 = sbr.rel (%p199) target = $region28
        $region27: #{tpu_custom_call.1} parent=23 // pred_region
          %s202 = sand.u32 %s44, 1
          %s203 = scalar_lea.sflag [#allocation3], %s202
          %s204 = sand.u32 %s44, 1
          %s205 = smul.addr %s204, 4
          %s206 = scalar_lea.vmem [#allocation2], %s205
          %s208 = ssub.s32 64, 64
          %209 = vsyncadd %s203, %s208
          %s210 = sadd.s32 %s28, %s27
          %s211 = smul.addr %s210, 64
          %s212 = scalar_lea.hbm %s0, %s211
          %s214 = sshll.u32 %s206, 4
          %s215 = int_to_ptr.vmem [resolvable:$true] %s214
          %217 = dma.hbm_to_vmem [thread:$0]  %s212, 64, %s215, %s203
        $region28: #{tpu_custom_call.1} parent=23 // pred_fallthru
          _
      $region24: #{tpu_custom_call.1} parent=5 // pred_fallthru
        _
      %p218 = scmp.le.s32.totalorder 1, %s20
      %p219 = scmp.lt.s32.totalorder %s20, 3
      %p220 = pnand %p218, %p219
      %p221 = pneg %p220
      // Predicated region
      $region29: #{tpu_custom_call.1} parent=5 // pred_check
        _
      $region30: #{tpu_custom_call.1} parent=5 // pred_check_branch
        %223 = sbr.rel (%p220) target = $region32
      $region31: #{tpu_custom_call.1} parent=5 // pred_region
        %s224 = ssub.s32 %s20, 1
        %s225 = sand.u32 %s47, 1
        %s226 = scalar_lea.sflag [#allocation3], %s225
        %s227 = sand.u32 %s47, 1
        %s228 = smul.addr %s227, 4
        %s229 = scalar_lea.vmem [#allocation2], %s228
        // Predicated region
        $region33: #{tpu_custom_call.1} parent=31 // pred_check
          %p230 = pneg %p60
        $region34: #{tpu_custom_call.1} parent=31 // pred_check_branch
          %232 = sbr.rel (%p230) target = $region36
        $region35: #{tpu_custom_call.1} parent=31 // pred_region
          %233 = dma.done %s226, 64
        $region36: #{tpu_custom_call.1} parent=31 // pred_fallthru
          _
        %s234 = sand.u32 %s47, 1
        %s235 = scalar_lea.sflag [#allocation3], %s234
        %s236 = sand.u32 %s47, 1
        %s237 = smul.addr %s236, 4
        %s238 = scalar_lea.vmem [#allocation2], %s237
        %p239 = pneg %p60
        %p240 = pneg %p57
        %p241 = scmp.lt.s32.totalorder %s30, 0
        %s242 = scalar_select %p241, %s30, 0
        %s243 = scalar_lea.vmem %s1, %s242
        %p244 = pneg %p86
        %p245 = pneg %p83
        %p246 = scmp.lt.s32.totalorder %s30, 0
        %s247 = scalar_select %p246, %s30, 0
        %s248 = scalar_lea.vmem %s2, %s247
        %p249 = pneg %p112
        %p250 = pneg %p109
        %p251 = pneg %p140
        %p252 = pneg %p137
        %s253 = sand.u32 %s127, 1
        %s254 = scalar_lea.sflag [#allocation4], %s253
        %s255 = sand.u32 %s127, 1
        %s256 = smul.addr %s255, 4
        %s257 = scalar_lea.vmem [#allocation5], %s256
        %p258 = pneg %p168
        %p259 = pneg %p165
        %s260 = sand.u32 %s155, 1
        %s261 = scalar_lea.sflag [#allocation7], %s260
        %s262 = sand.u32 %s155, 1
        %s263 = smul.addr %s262, 2
        %s264 = scalar_lea.vmem [#allocation6], %s263
        %p265 = scmp.lt.s32.totalorder %s30, 0
        %s266 = scalar_select %p265, %s30, 0
        %s267 = scalar_lea.vmem %s1, %s266
        %p268 = scmp.lt.s32.totalorder %s30, 0
        %s269 = scalar_select %p268, %s30, 0
        %s270 = scalar_lea.vmem %s2, %s269
        %v271 = vld [vmem:[%s229] sm:$0xf]
        %vm272 = vcmask 125952
        %v273 = vsel %vm272, %v271, 0.0
        %274 = vadd.xlane.f32.xlu0 %v273
        %v275 = vpop.xlane.xlu0 %274
        %v276 = vmul.f32 %v275, 0.0625
        %v277 = vmul.f32 %v271, %v271
        %v278 = vsel %vm272, %v277, 0.0
        %279 = vadd.xlane.f32.xlu0 %v278
        %v280 = vpop.xlane.xlu0 %279
        %v281 = vmul.f32 %v280, 0.0625
        %v282 = vmul.f32 %v276, %v276
        %v283 = vsub.f32 %v281, %v282
        %v284 = vmax.f32 %v283, 0.0
        %v285 = vld [vmem:[%s267] sm:$0x1]
        %v286 = vlaneseq
        %v287 = vshrl.u32 %v286, 7
        %v288 = vsub.s32 0, %v287
        %v289 = vrot.slane %v285, %v288
        %291 = vbcast.lane.b32.xlu0 %v289, 256
        %v292 = vpop.permute.xlu0 %291
        %v293 = vld [vmem:[%s270] sm:$0x1]
        %v294 = vlaneseq
        %v295 = vshrl.u32 %v294, 7
        %v296 = vsub.s32 0, %v295
        %v297 = vrot.slane %v293, %v296
        %299 = vbcast.lane.b32.xlu0 %v297, 256
        %v300 = vpop.permute.xlu0 %299
        %v301 = vmax.f32 %v284, 1e-05
        %v302 = vrsqrt.pop %v301
        %v303 = vmul.f32 %v292, %v302
        %v304 = vmul.f32 %v276, %v303
        %v305 = vsub.f32 %v300, %v304
        %v306 = vmul.f32 %v271, %v303
        %v307 = vadd.f32 %v306, %v305
        %308 = vst.msk [vmem:[%s257] sm:$0xf] %vm272, %v307
        %v310 = vlaneseq
        %v311 = vand.u32 %v310, 127
        %v312 = vlaneseq
        %v313 = vshrl.u32 %v312, 7
        %v314 = vsub.s32 %v311, %v313
        %v315 = vrot.slane %v276, %v314
        %vm317 = vcmask 24576
        %318 = vst.msk [vmem:[%s264] sm:$0x1] %vm317, %v315
        %v320 = vlaneseq
        %v321 = vshrl.u32 %v320, 7
        %v322 = vsub.s32 %v311, %v321
        %v323 = vrot.slane %v284, %v322
        %325 = vst.msk [vmem:[%s264 + $0x1] sm:$0x1] %vm317, %v323
        %s326 = sand.u32 %s127, 1
        %s327 = scalar_lea.sflag [#allocation4], %s326
        %s328 = sand.u32 %s127, 1
        %s329 = smul.addr %s328, 4
        %s330 = scalar_lea.vmem [#allocation5], %s329
        %s331 = sand.u32 %s155, 1
        %s332 = scalar_lea.sflag [#allocation7], %s331
        %s333 = sand.u32 %s155, 1
        %s334 = smul.addr %s333, 2
        %s335 = scalar_lea.vmem [#allocation6], %s334
        // Predicated region
        $region37: #{tpu_custom_call.1} parent=31 // pred_check
          %p336 = pneg %p137
        $region38: #{tpu_custom_call.1} parent=31 // pred_check_branch
          %338 = sbr.rel (%p336) target = $region40
        $region39: #{tpu_custom_call.1} parent=31 // pred_region
          %s340 = ssub.s32 64, 64
          %341 = vsyncadd %s327, %s340
          %s342 = sadd.s32 %s30, %s29
          %s343 = smul.addr %s342, 64
          %s344 = scalar_lea.hbm %s3, %s343
          %s346 = sshll.u32 %s330, 4
          %s347 = int_to_ptr.vmem [resolvable:$true] %s346
          %349 = dma.vmem_to_hbm [thread:$0]  %s347, 64, %s344, %s327
        $region40: #{tpu_custom_call.1} parent=31 // pred_fallthru
          _
        // Predicated region
        $region41: #{tpu_custom_call.1} parent=31 // pred_check
          %p350 = pneg %p165
        $region42: #{tpu_custom_call.1} parent=31 // pred_check_branch
          %352 = sbr.rel (%p350) target = $region44
        $region43: #{tpu_custom_call.1} parent=31 // pred_region
          %s354 = ssub.s32 32, 32
          %355 = vsyncadd %s332, %s354
          %s356 = sadd.s32 %s30, %s29
          %s357 = smul.addr %s356, 32
          %s358 = scalar_lea.hbm %s4, %s357
          %s360 = sshll.u32 %s335, 4
          %s361 = int_to_ptr.vmem [resolvable:$true] %s360
          %363 = dma.vmem_to_hbm [thread:$0]  %s361, 32, %s358, %s332
        $region44: #{tpu_custom_call.1} parent=31 // pred_fallthru
          _
      $region32: #{tpu_custom_call.1} parent=5 // pred_fallthru
        _
      %p364 = scmp.le.s32.totalorder 2, %s20
      // Predicated region
      $region45: #{tpu_custom_call.1} parent=5 // pred_check
        %p365 = pneg %p364
      $region46: #{tpu_custom_call.1} parent=5 // pred_check_branch
        %367 = sbr.rel (%p365) target = $region48
      $region47: #{tpu_custom_call.1} parent=5 // pred_region
        %s368 = ssub.s32 %s20, 2
        // Predicated region
        $region49: #{tpu_custom_call.1} parent=47 // pred_check
          %p369 = pneg %p143
        $region50: #{tpu_custom_call.1} parent=47 // pred_check_branch
          %371 = sbr.rel (%p369) target = $region52
        $region51: #{tpu_custom_call.1} parent=47 // pred_region
          %s372 = sand.u32 %s128, 1
          %s373 = scalar_lea.sflag [#allocation4], %s372
          %s374 = sand.u32 %s128, 1
          %s375 = smul.addr %s374, 4
          %s376 = scalar_lea.vmem [#allocation5], %s375
          %377 = dma.done %s373, 64
        $region52: #{tpu_custom_call.1} parent=47 // pred_fallthru
          _
        // Predicated region
        $region53: #{tpu_custom_call.1} parent=47 // pred_check
          %p378 = pneg %p171
        $region54: #{tpu_custom_call.1} parent=47 // pred_check_branch
          %380 = sbr.rel (%p378) target = $region56
        $region55: #{tpu_custom_call.1} parent=47 // pred_region
          %s381 = sand.u32 %s156, 1
          %s382 = scalar_lea.sflag [#allocation7], %s381
          %s383 = sand.u32 %s156, 1
          %s384 = smul.addr %s383, 2
          %s385 = scalar_lea.vmem [#allocation6], %s384
          %386 = dma.done %s382, 32
        $region56: #{tpu_custom_call.1} parent=47 // pred_fallthru
          _
      $region48: #{tpu_custom_call.1} parent=5 // pred_fallthru
        _
    $region6: #{tpu_custom_call.1} parent=1 // loop_footer
      %s24 = sadd.s32 1, %s20
    $region7: #{tpu_custom_call.1} parent=1 // loop_footer_branch
      %19 = sbr.rel target = $region3
    $region8: #{tpu_custom_call.1} parent=1 // loop_exit
      _
    %387 = vsyncpa [#allocation3], 1
    %s388 = scalar_lea.sflag [#allocation3], 1
    %389 = vsyncpa %s388, 1
    %390 = vsyncpa [#allocation4], 1
    %s391 = scalar_lea.sflag [#allocation4], 1
    %392 = vsyncpa %s391, 1
    %393 = vsyncpa [#allocation7], 1
    %s394 = scalar_lea.sflag [#allocation7], 1
    %395 = vsyncpa %s394, 1

</llo_original>
